<compile_context>
chip_gen: v6e
topology: v6e:2x2x1
jax: 0.10.0
libtpu: 0.0.40
codegen_flags: <defaults>
</compile_context>

<pallas_src>
import jax
import jax.numpy as jnp
import numpy as np
from jax.experimental import pallas as pl
from jax.experimental.pallas import tpu as pltpu

# ----------------------- configuration (small, deterministic) -----------------------
B = 2
C_IN = 4
C_OUT = 8
T_LEN = 24
N_LAYERS = 2                    # "n" in the PyTorch module
CONV_KS = 3
CONV_PAD = (CONV_KS - 1) // 2   # padding='same'
MP_KS = 3
MP_STRIDE = 3
FC_DIM = C_OUT * (2 ** 4)       # fc_alpha = 2**4  -> 128
NUM_PRELU = N_LAYERS + 1        # expand-PReLU + (n-1) block PReLUs + final PReLU
T_OUT = (T_LEN - MP_KS) // MP_STRIDE + 1
T_TOT = B * T_LEN               # batch folded onto the time/lane axis
BN_EPS = 1e-5

# Max-pool windows must never touch padded / wrapped lanes or cross a batch boundary
# (the windowed-max uses wrap-around rolls whose garbage lanes are never selected).
assert (T_OUT - 1) * MP_STRIDE + MP_KS <= T_LEN, "max-pool coverage condition violated"

# ---- packed parameter/constant slab layout (SLAB_ROWS x SLAB_COLS, f32) ----
ROW_W1 = 0                                      # [0:8)   se_w1^T              (8, FC_DIM)
ROW_W2 = ROW_W1 + C_OUT                         # [8:16)  se_w2 (PyTorch form) (8, FC_DIM)
ROW_MISC = ROW_W2 + C_OUT                       # [16:24) per-channel misc block:
#   cols [0:C_IN)        : folded (w_exp * bn_scale)^T
#   col  C_IN            : folded expansion bias
#   cols [C_IN+1 : +N)   : folded conv biases (per layer)
#   col  C_IN+1+N_LAYERS : se_b2
ROW_B1 = ROW_MISC + C_OUT                       # row 24 : se_b1 (FC_DIM,)
ROW_CONV = ((ROW_B1 + 1 + 7) // 8) * 8          # 32     : folded im2col conv weights
ROW_MASK = ROW_CONV + N_LAYERS * C_OUT          # 48     : tap boundary mask (3*C_OUT, T_TOT)
ROW_GMAP = ROW_MASK + CONV_KS * C_OUT           # 72     : per-batch 0/1 map   (B, T_TOT)
ROW_SEL = ((ROW_GMAP + B + 7) // 8) * 8         # 80     : max-pool selector   (T_TOT, B*T_OUT)
SLAB_ROWS = ROW_SEL + T_TOT                     # 128
SLAB_COLS = max(FC_DIM, CONV_KS * C_OUT, T_TOT, B * T_OUT, C_IN + 2 + N_LAYERS)  # 128


# ----------------------------------- Pallas kernel ----------------------------------
def sampcnn_kernel(x_ref, slab_ref, alpha_ref, o_ref):
    f32 = jnp.float32

    def prelu(v, a):                      # a is a scalar read from SMEM
        return jnp.where(v > 0, v, a * v)

    x_ct = x_ref[...]                                              # (C_IN, B*T) = (4, 48)

    # static matrices, packed host-side into the slab (loaded once, reused everywhere)
    mask_taps = slab_ref[ROW_MASK:ROW_MASK + CONV_KS * C_OUT, 0:T_TOT]   # (24, 48)
    gmap = slab_ref[ROW_GMAP:ROW_GMAP + B, 0:T_TOT]                      # (2, 48)
    sel = slab_ref[ROW_SEL:ROW_SEL + T_TOT, 0:B * T_OUT]                 # (48, 16)

    # ---- channel expansion: Conv1d(ks=1) with BatchNorm1d(eval) folded in + PReLU ----
    w_exp_t = slab_ref[ROW_MISC:ROW_MISC + C_OUT, 0:C_IN]                # (8, 4)
    b_exp = slab_ref[ROW_MISC:ROW_MISC + C_OUT, C_IN:C_IN + 1]           # (8, 1)
    scl = prelu(jnp.dot(w_exp_t, x_ct, preferred_element_type=f32) + b_exp,
                alpha_ref[0])                                            # (8, 48)

    # ---- main stack: n x (Conv1d ks=3 'same' + BN folded), PReLU between blocks ----
    cur = scl
    for i in range(N_LAYERS):
        # shifted taps via roll; wrapped / batch-crossing lanes zeroed by constant mask
        taps = [cur if k == CONV_PAD else jnp.roll(cur, CONV_PAD - k, axis=1)
                for k in range(CONV_KS)]
        x2 = jnp.concatenate(taps, axis=0) * mask_taps                   # (3*8, 48) im2col
        w_c = slab_ref[ROW_CONV + C_OUT * i:ROW_CONV + C_OUT * (i + 1),
                       0:CONV_KS * C_OUT]                                # (8, 24) folded
        b_c = slab_ref[ROW_MISC:ROW_MISC + C_OUT, C_IN + 1 + i:C_IN + 2 + i]
        cur = jnp.dot(w_c, x2, preferred_element_type=f32) + b_c         # (8, 48)
        if i < N_LAYERS - 1:
            cur = prelu(cur, alpha_ref[1 + i])
        # TODO(synk): nn.Dropout is identity in eval mode; training-time dropout not implemented.
    first_out = cur

    # ---- squeeze-excite with FC_DIM on the lane axis (dense (2,128) intermediate) ----
    # pooled_t[b, c] = mean_t first_out[c, b*T + t]
    pooled_t = jax.lax.dot_general(gmap, first_out, (((1,), (1,)), ((), ())),
                                   preferred_element_type=f32) * (1.0 / T_LEN)   # (2, 8)
    w1t = slab_ref[ROW_W1:ROW_W1 + C_OUT, 0:FC_DIM]                      # (8, 128)
    b1 = slab_ref[ROW_B1:ROW_B1 + 1, 0:FC_DIM]                           # (1, 128)
    z_t = jnp.maximum(jnp.dot(pooled_t, w1t, preferred_element_type=f32) + b1, 0.0)  # (2, 128)
    w2 = slab_ref[ROW_W2:ROW_W2 + C_OUT, 0:FC_DIM]                       # (8, 128)
    b2 = slab_ref[ROW_MISC:ROW_MISC + C_OUT,
                  C_IN + 1 + N_LAYERS:C_IN + 2 + N_LAYERS]               # (8, 1)
    gate = jax.nn.sigmoid(
        jax.lax.dot_general(w2, z_t, (((1,), (1,)), ((), ())),
                            preferred_element_type=f32) + b2)            # (8, 2)
    gate_full = jnp.dot(gate, gmap, preferred_element_type=f32)          # (8, 48)

    # ---- SE scale + residual add + final PReLU ----
    res = prelu(first_out * gate_full + scl, alpha_ref[NUM_PRELU - 1])   # (8, 48)

    # ---- MaxPool1d(ks=3, stride=3): windowed max + selection-matrix matmul ----
    m = res
    for k in range(1, MP_KS):
        # wrap-around lanes are never selected (see module-level coverage assert)
        m = jnp.maximum(m, jnp.roll(res, -k, axis=1))
    o_ref[...] = jnp.dot(m, sel, preferred_element_type=f32)             # (8, B*T_OUT)


# ------------------------------------- wrapper ---------------------------------------
@jax.jit
def sampcnn_resn_forward(x_nct, packed):
    """x_nct: (B, C_IN, T) float32 in the PyTorch NCW layout."""
    x_ct = jnp.transpose(x_nct.astype(jnp.float32), (1, 0, 2)).reshape(C_IN, T_TOT)
    vmem = pl.BlockSpec(memory_space=pltpu.MemorySpace.VMEM)
    smem = pl.BlockSpec(memory_space=pltpu.MemorySpace.SMEM)
    out16 = pl.pallas_call(
        sampcnn_kernel,
        out_shape=jax.ShapeDtypeStruct((C_OUT, B * T_OUT), jnp.float32),
        in_specs=[vmem, vmem, smem],
        out_specs=vmem,
    )(x_ct, packed['slab'], packed['alphas'])
    # back to PyTorch (B, C_OUT, T_OUT)
    return jnp.transpose(out16.reshape(C_OUT, B, T_OUT), (1, 0, 2))


# -------------------------- parameter packing (done once, host side) -----------------
def pack_params(p):
    slab = np.zeros((SLAB_ROWS, SLAB_COLS), np.float32)

    bne_s = np.asarray(p['bne_scale'][0])
    bne_b = np.asarray(p['bne_shift'][0])
    w_exp = np.asarray(p['w_exp'])

    # SE weights (dense 8x128 rows) and biases
    slab[ROW_W1:ROW_W1 + C_OUT, 0:FC_DIM] = np.asarray(p['se_w1'])           # W1^T
    slab[ROW_W2:ROW_W2 + C_OUT, 0:FC_DIM] = np.asarray(p['se_w2']).T         # W2 (PyTorch form)
    slab[ROW_B1, 0:FC_DIM] = np.asarray(p['se_b1'][0])

    # expansion conv (BN folded) + se_b2
    slab[ROW_MISC:ROW_MISC + C_OUT, 0:C_IN] = (w_exp * bne_s[None, :]).T
    slab[ROW_MISC:ROW_MISC + C_OUT, C_IN] = np.asarray(p['b_exp'][0]) * bne_s + bne_b
    slab[ROW_MISC:ROW_MISC + C_OUT, C_IN + 1 + N_LAYERS] = np.asarray(p['se_b2'][0])

    # conv stack (BN folded into im2col weights and biases)
    for i in range(N_LAYERS):
        s = np.asarray(p['bn_scale'][i, 0])
        sh = np.asarray(p['bn_shift'][i, 0])
        # im2col weight [c_out, k*C + c_in] = w_conv[i, k, c_in, c_out]
        w = np.transpose(np.asarray(p['w_conv'][i]), (2, 0, 1)).reshape(C_OUT, CONV_KS * C_OUT)
        slab[ROW_CONV + C_OUT * i:ROW_CONV + C_OUT * (i + 1),
             0:CONV_KS * C_OUT] = w * s[:, None]
        slab[ROW_MISC:ROW_MISC + C_OUT, C_IN + 1 + i] = np.asarray(p['b_conv'][i, 0]) * s + sh

    # ---- static matrices (masks / maps / selectors), also DMAed with the slab ----
    j = np.arange(T_TOT)
    for k in range(CONV_KS):                                     # tap boundary masks
        off = k - CONV_PAD
        if off < 0:
            keep = (j % T_LEN) >= -off
        elif off > 0:
            keep = (j % T_LEN) < T_LEN - off
        else:
            keep = np.ones(T_TOT, bool)
        slab[ROW_MASK + k * C_OUT:ROW_MASK + (k + 1) * C_OUT, 0:T_TOT] = \
            keep.astype(np.float32)[None, :]
    slab[ROW_GMAP:ROW_GMAP + B, 0:T_TOT] = \
        (j[None, :] // T_LEN == np.arange(B)[:, None]).astype(np.float32)
    for b in range(B):                                           # max-pool window selector
        for t in range(T_OUT):
            slab[ROW_SEL + b * T_LEN + t * MP_STRIDE, b * T_OUT + t] = 1.0

    return {'slab': jnp.asarray(slab),
            'alphas': jnp.asarray(np.asarray(p['alphas'], np.float32))}   # (NUM_PRELU,) -> SMEM


# -------------------------- deterministic parameter construction ---------------------
def init_params(key):
    ks = jax.random.split(key, 12)

    def bn_fold(kk, prefix):
        k1, k2, k3, k4 = jax.random.split(kk, 4)
        gamma = 1.0 + 0.1 * jax.random.normal(k1, prefix + (C_OUT,), jnp.float32)
        beta = 0.1 * jax.random.normal(k2, prefix + (C_OUT,), jnp.float32)
        mean = 0.1 * jax.random.normal(k3, prefix + (C_OUT,), jnp.float32)
        var = 1.0 + 0.2 * jax.random.uniform(k4, prefix + (C_OUT,), jnp.float32)
        scale = gamma / jnp.sqrt(var + BN_EPS)
        shift = beta - mean * scale
        return scale, shift

    p = {}
    p['w_exp'] = 0.3 * jax.random.normal(ks[0], (C_IN, C_OUT), jnp.float32)
    p['b_exp'] = 0.1 * jax.random.normal(ks[1], (1, C_OUT), jnp.float32)
    p['bne_scale'], p['bne_shift'] = bn_fold(ks[2], (1,))
    p['w_conv'] = 0.3 * jax.random.normal(ks[3], (N_LAYERS, CONV_KS, C_OUT, C_OUT), jnp.float32)
    p['b_conv'] = 0.1 * jax.random.normal(ks[4], (N_LAYERS, 1, C_OUT), jnp.float32)
    p['bn_scale'], p['bn_shift'] = bn_fold(ks[5], (N_LAYERS, 1))
    p['se_w1'] = 0.3 * jax.random.normal(ks[6], (C_OUT, FC_DIM), jnp.float32)
    p['se_b1'] = 0.1 * jax.random.normal(ks[7], (1, FC_DIM), jnp.float32)
    p['se_w2'] = 0.3 * jax.random.normal(ks[8], (FC_DIM, C_OUT), jnp.float32)
    p['se_b2'] = 0.1 * jax.random.normal(ks[9], (1, C_OUT), jnp.float32)
    # PyTorch default init is 0.25 for every PReLU; distinct values make the test stricter.
    p['alphas'] = 0.25 + 0.05 * jnp.arange(NUM_PRELU, dtype=jnp.float32)
    return p


# --------------------------- pure-JAX reference (PyTorch semantics) -------------------
def ref_forward(x_nct, p):
    x = jnp.transpose(x_nct, (0, 2, 1)).astype(jnp.float32)      # (B, T, C_IN)
    h = jnp.einsum('btc,co->bto', x, p['w_exp']) + p['b_exp']
    h = h * p['bne_scale'] + p['bne_shift']
    scl = jnp.where(h > 0, h, p['alphas'][0] * h)
    cur = scl
    for i in range(N_LAYERS):
        cur = jax.lax.conv_general_dilated(
            cur, p['w_conv'][i], window_strides=(1,), padding='SAME',
            dimension_numbers=('NWC', 'WIO', 'NWC')) + p['b_conv'][i]
        cur = cur * p['bn_scale'][i] + p['bn_shift'][i]
        if i < N_LAYERS - 1:
            a = p['alphas'][1 + i]
            cur = jnp.where(cur > 0, cur, a * cur)
    first = cur
    pooled = jnp.mean(first, axis=1)                             # (B, C_OUT)
    se = jax.nn.relu(pooled @ p['se_w1'] + p['se_b1'])
    se = jax.nn.sigmoid(se @ p['se_w2'] + p['se_b2'])
    res = first * se[:, None, :] + scl
    a_last = p['alphas'][NUM_PRELU - 1]
    res = jnp.where(res > 0, res, a_last * res)
    pooled_max = res[:, :T_OUT * MP_STRIDE, :].reshape(B, T_OUT, MP_KS, C_OUT).max(axis=2)
    return jnp.transpose(pooled_max, (0, 2, 1))                  # (B, C_OUT, T_OUT)


if __name__ == "__main__":
    key = jax.random.PRNGKey(0)
    k_x, k_p = jax.random.split(key)
    params = init_params(k_p)
    packed = pack_params(params)
    x = jax.random.normal(k_x, (B, C_IN, T_LEN), jnp.float32)    # PyTorch NCW input

    out = jax.block_until_ready(sampcnn_resn_forward(x, packed))
    ref = jax.block_until_ready(ref_forward(x, params))
    assert out.shape == (B, C_OUT, T_OUT), out.shape
    np.testing.assert_allclose(np.asarray(out), np.asarray(ref), rtol=2e-4, atol=2e-4)
    print("KERNEL_OK")
</pallas_src>

<mosaic_0001>
module attributes {stable_mosaic.version = 11 : i64} {
  func.func @sampcnn_kernel(%arg0: memref<4x48xf32, #tpu.memory_space<vmem>>, %arg1: memref<128x128xf32, #tpu.memory_space<vmem>>, %arg2: memref<3xf32, #tpu.memory_space<smem>>, %arg3: memref<8x16xf32, #tpu.memory_space<vmem>>) attributes {dimension_semantics = [], scalar_prefetch = 0 : i64, scratch_operands = 0 : i64, tpu.core_type = #tpu.core_type<tc>} {
    %c0 = arith.constant 0 : index
    %c0_0 = arith.constant 0 : index
    %0 = vector.load %arg0[%c0, %c0_0] : memref<4x48xf32, #tpu.memory_space<vmem>>, vector<4x48xf32>
    %c48 = arith.constant 48 : index
    %c0_1 = arith.constant 0 : index
    %1 = vector.load %arg1[%c48, %c0_1] : memref<128x128xf32, #tpu.memory_space<vmem>>, vector<24x48xf32>
    %c72 = arith.constant 72 : index
    %c0_2 = arith.constant 0 : index
    %2 = vector.load %arg1[%c72, %c0_2] : memref<128x128xf32, #tpu.memory_space<vmem>>, vector<2x48xf32>
    %c80 = arith.constant 80 : index
    %c0_3 = arith.constant 0 : index
    %3 = vector.load %arg1[%c80, %c0_3] : memref<128x128xf32, #tpu.memory_space<vmem>>, vector<48x16xf32>
    %c16 = arith.constant 16 : index
    %c0_4 = arith.constant 0 : index
    %4 = vector.load %arg1[%c16, %c0_4] : memref<128x128xf32, #tpu.memory_space<vmem>>, vector<8x4xf32>
    %c16_5 = arith.constant 16 : index
    %c4 = arith.constant 4 : index
    %5 = vector.load %arg1[%c16_5, %c4] : memref<128x128xf32, #tpu.memory_space<vmem>>, vector<8x1xf32>
    %cst = arith.constant dense<0.000000e+00> : vector<8x48xf32>
    %6 = tpu.matmul %4, %0, %cst {dimension_numbers = #tpu.dot_dimension_numbers<[1], [0], [0], [1], [0, 0, 1, 1], [], []>} : vector<8x4xf32>, vector<4x48xf32>, vector<8x48xf32> -> vector<8x48xf32>
    %7 = vector.broadcast %5 : vector<8x1xf32> to vector<8x48xf32>
    %8 = arith.addf %6, %7 : vector<8x48xf32>
    %c0_6 = arith.constant 0 : index
    %9 = memref.load %arg2[%c0_6] : memref<3xf32, #tpu.memory_space<smem>>
    %cst_7 = arith.constant 0.000000e+00 : f32
    %10 = vector.broadcast %cst_7 : f32 to vector<8x48xf32>
    %11 = arith.cmpf ogt, %8, %10 : vector<8x48xf32>
    %12 = vector.broadcast %9 : f32 to vector<8x48xf32>
    %13 = arith.mulf %12, %8 : vector<8x48xf32>
    %14 = arith.select %11, %8, %13 : vector<8x48xi1>, vector<8x48xf32>
    %15 = vector.extract_strided_slice %14 {offsets = [0, 47], sizes = [8, 1], strides = [1, 1]} : vector<8x48xf32> to vector<8x1xf32>
    %16 = vector.extract_strided_slice %14 {offsets = [0, 0], sizes = [8, 47], strides = [1, 1]} : vector<8x48xf32> to vector<8x47xf32>
    %17 = tpu.concatenate %15, %16 in 1 : vector<8x1xf32>, vector<8x47xf32> -> vector<8x48xf32>
    %18 = vector.extract_strided_slice %14 {offsets = [0, 1], sizes = [8, 47], strides = [1, 1]} : vector<8x48xf32> to vector<8x47xf32>
    %19 = vector.extract_strided_slice %14 {offsets = [0, 0], sizes = [8, 1], strides = [1, 1]} : vector<8x48xf32> to vector<8x1xf32>
    %20 = tpu.concatenate %18, %19 in 1 : vector<8x47xf32>, vector<8x1xf32> -> vector<8x48xf32>
    %21 = tpu.concatenate %17, %14, %20 in 0 : vector<8x48xf32>, vector<8x48xf32>, vector<8x48xf32> -> vector<24x48xf32>
    %22 = arith.mulf %21, %1 : vector<24x48xf32>
    %c32 = arith.constant 32 : index
    %c0_8 = arith.constant 0 : index
    %23 = vector.load %arg1[%c32, %c0_8] : memref<128x128xf32, #tpu.memory_space<vmem>>, vector<8x24xf32>
    %c16_9 = arith.constant 16 : index
    %c5 = arith.constant 5 : index
    %24 = vector.load %arg1[%c16_9, %c5] : memref<128x128xf32, #tpu.memory_space<vmem>>, vector<8x1xf32>
    %cst_10 = arith.constant dense<0.000000e+00> : vector<8x48xf32>
    %25 = tpu.matmul %23, %22, %cst_10 {dimension_numbers = #tpu.dot_dimension_numbers<[1], [0], [0], [1], [0, 0, 1, 1], [], []>} : vector<8x24xf32>, vector<24x48xf32>, vector<8x48xf32> -> vector<8x48xf32>
    %26 = vector.broadcast %24 : vector<8x1xf32> to vector<8x48xf32>
    %27 = arith.addf %25, %26 : vector<8x48xf32>
    %c1 = arith.constant 1 : index
    %28 = memref.load %arg2[%c1] : memref<3xf32, #tpu.memory_space<smem>>
    %cst_11 = arith.constant 0.000000e+00 : f32
    %29 = vector.broadcast %cst_11 : f32 to vector<8x48xf32>
    %30 = arith.cmpf ogt, %27, %29 : vector<8x48xf32>
    %31 = vector.broadcast %28 : f32 to vector<8x48xf32>
    %32 = arith.mulf %31, %27 : vector<8x48xf32>
    %33 = arith.select %30, %27, %32 : vector<8x48xi1>, vector<8x48xf32>
    %34 = vector.extract_strided_slice %33 {offsets = [0, 47], sizes = [8, 1], strides = [1, 1]} : vector<8x48xf32> to vector<8x1xf32>
    %35 = vector.extract_strided_slice %33 {offsets = [0, 0], sizes = [8, 47], strides = [1, 1]} : vector<8x48xf32> to vector<8x47xf32>
    %36 = tpu.concatenate %34, %35 in 1 : vector<8x1xf32>, vector<8x47xf32> -> vector<8x48xf32>
    %37 = vector.extract_strided_slice %33 {offsets = [0, 1], sizes = [8, 47], strides = [1, 1]} : vector<8x48xf32> to vector<8x47xf32>
    %38 = vector.extract_strided_slice %33 {offsets = [0, 0], sizes = [8, 1], strides = [1, 1]} : vector<8x48xf32> to vector<8x1xf32>
    %39 = tpu.concatenate %37, %38 in 1 : vector<8x47xf32>, vector<8x1xf32> -> vector<8x48xf32>
    %40 = tpu.concatenate %36, %33, %39 in 0 : vector<8x48xf32>, vector<8x48xf32>, vector<8x48xf32> -> vector<24x48xf32>
    %41 = arith.mulf %40, %1 : vector<24x48xf32>
    %c40 = arith.constant 40 : index
    %c0_12 = arith.constant 0 : index
    %42 = vector.load %arg1[%c40, %c0_12] : memref<128x128xf32, #tpu.memory_space<vmem>>, vector<8x24xf32>
    %c16_13 = arith.constant 16 : index
    %c6 = arith.constant 6 : index
    %43 = vector.load %arg1[%c16_13, %c6] : memref<128x128xf32, #tpu.memory_space<vmem>>, vector<8x1xf32>
    %cst_14 = arith.constant dense<0.000000e+00> : vector<8x48xf32>
    %44 = tpu.matmul %42, %41, %cst_14 {dimension_numbers = #tpu.dot_dimension_numbers<[1], [0], [0], [1], [0, 0, 1, 1], [], []>} : vector<8x24xf32>, vector<24x48xf32>, vector<8x48xf32> -> vector<8x48xf32>
    %45 = vector.broadcast %43 : vector<8x1xf32> to vector<8x48xf32>
    %46 = arith.addf %44, %45 : vector<8x48xf32>
    %cst_15 = arith.constant dense<0.000000e+00> : vector<2x8xf32>
    %47 = tpu.matmul %2, %46, %cst_15 {dimension_numbers = #tpu.dot_dimension_numbers<[1], [1], [0], [0], [0, 0, 1, 0], [], []>} : vector<2x48xf32>, vector<8x48xf32>, vector<2x8xf32> -> vector<2x8xf32>
    %cst_16 = arith.constant 0.0416666679 : f32
    %48 = vector.broadcast %cst_16 : f32 to vector<2x8xf32>
    %49 = arith.mulf %47, %48 : vector<2x8xf32>
    %c0_17 = arith.constant 0 : index
    %c0_18 = arith.constant 0 : index
    %50 = vector.load %arg1[%c0_17, %c0_18] : memref<128x128xf32, #tpu.memory_space<vmem>>, vector<8x128xf32>
    %c24 = arith.constant 24 : index
    %c0_19 = arith.constant 0 : index
    %51 = vector.load %arg1[%c24, %c0_19] : memref<128x128xf32, #tpu.memory_space<vmem>>, vector<1x128xf32>
    %cst_20 = arith.constant dense<0.000000e+00> : vector<2x128xf32>
    %52 = tpu.matmul %49, %50, %cst_20 {dimension_numbers = #tpu.dot_dimension_numbers<[1], [0], [0], [1], [0, 0, 1, 1], [], []>} : vector<2x8xf32>, vector<8x128xf32>, vector<2x128xf32> -> vector<2x128xf32>
    %53 = vector.broadcast %51 : vector<1x128xf32> to vector<2x128xf32>
    %54 = arith.addf %52, %53 : vector<2x128xf32>
    %cst_21 = arith.constant 0.000000e+00 : f32
    %55 = vector.broadcast %cst_21 : f32 to vector<2x128xf32>
    %56 = arith.maximumf %54, %55 : vector<2x128xf32>
    %c8 = arith.constant 8 : index
    %c0_22 = arith.constant 0 : index
    %57 = vector.load %arg1[%c8, %c0_22] : memref<128x128xf32, #tpu.memory_space<vmem>>, vector<8x128xf32>
    %c16_23 = arith.constant 16 : index
    %c7 = arith.constant 7 : index
    %58 = vector.load %arg1[%c16_23, %c7] : memref<128x128xf32, #tpu.memory_space<vmem>>, vector<8x1xf32>
    %cst_24 = arith.constant dense<0.000000e+00> : vector<8x2xf32>
    %59 = tpu.matmul %57, %56, %cst_24 {dimension_numbers = #tpu.dot_dimension_numbers<[1], [1], [0], [0], [0, 0, 1, 0], [], []>} : vector<8x128xf32>, vector<2x128xf32>, vector<8x2xf32> -> vector<8x2xf32>
    %60 = vector.broadcast %58 : vector<8x1xf32> to vector<8x2xf32>
    %61 = arith.addf %59, %60 : vector<8x2xf32>
    %62 = arith.negf %61 : vector<8x2xf32>
    %63 = math.exp %62 : vector<8x2xf32>
    %cst_25 = arith.constant 1.000000e+00 : f32
    %64 = vector.broadcast %cst_25 : f32 to vector<8x2xf32>
    %65 = arith.addf %64, %63 : vector<8x2xf32>
    %66 = arith.divf %64, %65 : vector<8x2xf32>
    %cst_26 = arith.constant dense<0.000000e+00> : vector<8x48xf32>
    %67 = tpu.matmul %66, %2, %cst_26 {dimension_numbers = #tpu.dot_dimension_numbers<[1], [0], [0], [1], [0, 0, 1, 1], [], []>} : vector<8x2xf32>, vector<2x48xf32>, vector<8x48xf32> -> vector<8x48xf32>
    %68 = arith.mulf %46, %67 : vector<8x48xf32>
    %69 = arith.addf %68, %14 : vector<8x48xf32>
    %c2 = arith.constant 2 : index
    %70 = memref.load %arg2[%c2] : memref<3xf32, #tpu.memory_space<smem>>
    %cst_27 = arith.constant 0.000000e+00 : f32
    %71 = vector.broadcast %cst_27 : f32 to vector<8x48xf32>
    %72 = arith.cmpf ogt, %69, %71 : vector<8x48xf32>
    %73 = vector.broadcast %70 : f32 to vector<8x48xf32>
    %74 = arith.mulf %73, %69 : vector<8x48xf32>
    %75 = arith.select %72, %69, %74 : vector<8x48xi1>, vector<8x48xf32>
    %76 = vector.extract_strided_slice %75 {offsets = [0, 1], sizes = [8, 47], strides = [1, 1]} : vector<8x48xf32> to vector<8x47xf32>
    %77 = vector.extract_strided_slice %75 {offsets = [0, 0], sizes = [8, 1], strides = [1, 1]} : vector<8x48xf32> to vector<8x1xf32>
    %78 = tpu.concatenate %76, %77 in 1 : vector<8x47xf32>, vector<8x1xf32> -> vector<8x48xf32>
    %79 = arith.maximumf %75, %78 : vector<8x48xf32>
    %80 = vector.extract_strided_slice %75 {offsets = [0, 2], sizes = [8, 46], strides = [1, 1]} : vector<8x48xf32> to vector<8x46xf32>
    %81 = vector.extract_strided_slice %75 {offsets = [0, 0], sizes = [8, 2], strides = [1, 1]} : vector<8x48xf32> to vector<8x2xf32>
    %82 = tpu.concatenate %80, %81 in 1 : vector<8x46xf32>, vector<8x2xf32> -> vector<8x48xf32>
    %83 = arith.maximumf %79, %82 : vector<8x48xf32>
    %cst_28 = arith.constant dense<0.000000e+00> : vector<8x16xf32>
    %84 = tpu.matmul %83, %3, %cst_28 {dimension_numbers = #tpu.dot_dimension_numbers<[1], [0], [0], [1], [0, 0, 1, 1], [], []>} : vector<8x48xf32>, vector<48x16xf32>, vector<8x16xf32> -> vector<8x16xf32>
    %c0_29 = arith.constant 0 : index
    %c0_30 = arith.constant 0 : index
    %85 = vector.load %arg3[%c0_29, %c0_30] : memref<8x16xf32, #tpu.memory_space<vmem>>, vector<8x16xf32>
    tpu.vector_store %arg3[%c0_29, %c0_30], %84 {strides = array<i32>} : memref<8x16xf32, #tpu.memory_space<vmem>>, vector<8x16xf32>,
    return
  }
}

</mosaic_0001>

<llo_original>
// kernel: sampcnn_resn_forward.1
$region0: #{sampcnn_resn_forward.1}
  #allocation0 [shape = 'u32[]', space=smem, size = 0x4, offset = 0x4, fixed_abs, tag = 'smem constant byte address 0x4 - core index']
  #allocation1 [shape = 'u32[144,128]{1,0:T(1,128)}', space=vmem, size = 0x12000, scoped, tag = 'internal scratch']
  %s0 = inlined_call_operand.vmem [shape: f32[4,48], index: 0, kind: input, shape index: {}]
  %s1 = inlined_call_operand.hbm [shape: f32[128,128], index: 1, kind: input, shape index: {}]
  %s2 = inlined_call_operand.vmem [shape: f32[3], index: 2, kind: input, shape index: {}]
  %s3 = inlined_call_operand.vmem [shape: f32[8,16], index: 3, kind: output, shape index: {}]
  %s4 = sld [smem:[#allocation0]]
  $region30: #{sampcnn_resn_forward.1} parent=0
    _
  %s6 = ssub.s32 1, %s4
  %s7 = scalar_select 0, %s6, %s4
  $region1: #{sampcnn_resn_forward.1} parent=0
    #allocation2 [shape = 'u8[65536]{0}', space=vmem, size = 0x10000, scoped, tag = 'input window, operand 1, single buffered']
    #allocation3 [shape = 's32[1]{0}', space=sflag, size = 0x4, scoped, tag = 'scoped memory for sampcnn_resn_forward.1']
    #allocation4 [shape = 's32[1]{0}', space=sflag, size = 0x4, scoped, tag = 'scoped memory for sampcnn_resn_forward.1']
    #allocation5 [shape = 'u8[512]{0}', space=smem, size = 0x200, scoped, tag = 'input window, operand 2, single buffered']
    %8 = vsyncpa [#allocation3], 0
    %9 = vsyncpa [#allocation4], 0
    // Predicated region
    $region2: #{sampcnn_resn_forward.1} parent=1 // pred_check
      _
    $region3: #{sampcnn_resn_forward.1} parent=1 // pred_check_branch
      %11 = sbr.rel (0) target = $region5
    $region4: #{sampcnn_resn_forward.1} parent=1 // pred_region
      _
    $region5: #{sampcnn_resn_forward.1} parent=1 // pred_fallthru
      _
    // Predicated region
    $region6: #{sampcnn_resn_forward.1} parent=1 // pred_check
      _
    $region7: #{sampcnn_resn_forward.1} parent=1 // pred_check_branch
      %13 = sbr.rel (0) target = $region9
    $region8: #{sampcnn_resn_forward.1} parent=1 // pred_region
      %s15 = ssub.s32 2048, 2048
      %16 = vsyncadd [#allocation3], %s15
      %s17 = sshll.u32 [#allocation2], 4
      %s18 = int_to_ptr.vmem [resolvable:$true] %s17
      %23 = dma.hbm_to_vmem [thread:$0]  %s1, 2048, %s18, [#allocation3], 128, 128, 8
    $region9: #{sampcnn_resn_forward.1} parent=1 // pred_fallthru
      _
    // Predicated region
    $region10: #{sampcnn_resn_forward.1} parent=1 // pred_check
      _
    $region11: #{sampcnn_resn_forward.1} parent=1 // pred_check_branch
      %25 = sbr.rel (0) target = $region13
    $region12: #{sampcnn_resn_forward.1} parent=1 // pred_region
      %s27 = ssub.s32 16, 16
      %28 = vsyncadd [#allocation4], %s27
      %s30 = sshll.u32 %s2, 4
      %s31 = int_to_ptr.vmem [resolvable:$true] %s30
      %33 = dma.vmem_to_smem %s31, 16, [#allocation5], [#allocation4]
    $region13: #{sampcnn_resn_forward.1} parent=1 // pred_fallthru
      _
    // Predicated region
    $region14: #{sampcnn_resn_forward.1} parent=1 // pred_check
      _
    $region15: #{sampcnn_resn_forward.1} parent=1 // pred_check_branch
      %35 = sbr.rel (0) target = $region17
    $region16: #{sampcnn_resn_forward.1} parent=1 // pred_region
      %36 = dma.done [#allocation3], 2048
    $region17: #{sampcnn_resn_forward.1} parent=1 // pred_fallthru
      _
    // Predicated region
    $region18: #{sampcnn_resn_forward.1} parent=1 // pred_check
      _
    $region19: #{sampcnn_resn_forward.1} parent=1 // pred_check_branch
      %38 = sbr.rel (0) target = $region21
    $region20: #{sampcnn_resn_forward.1} parent=1 // pred_region
      %39 = dma.done [#allocation4], 16
    $region21: #{sampcnn_resn_forward.1} parent=1 // pred_fallthru
      _
    %40 = sfence
    %v41 = vld [vmem:[%s0] sm:$0xf]
    %v42 = vld [vmem:[#allocation2 + $0x30] sm:$0xff]
    %v43 = vld [vmem:[#allocation2 + $0x38] sm:$0xff]
    %v44 = vld [vmem:[#allocation2 + $0x40] sm:$0xff]
    %v45 = vld [vmem:[#allocation2 + $0x48] sm:$0x3]
    %v46 = vld [vmem:[#allocation2 + $0x50] sm:$0xff]
    %v47 = vld [vmem:[#allocation2 + $0x58] sm:$0xff]
    %v48 = vld [vmem:[#allocation2 + $0x60] sm:$0xff]
    %v49 = vld [vmem:[#allocation2 + $0x68] sm:$0xff]
    %v50 = vld [vmem:[#allocation2 + $0x70] sm:$0xff]
    %v51 = vld [vmem:[#allocation2 + $0x78] sm:$0xff]
    %v52 = vld [vmem:[#allocation2 + $0x10] sm:$0xff]
    %54 = vset.pattern.permute.xlu0 4
    %55 = vperm.xlu0 %54, %v52
    %v56 = vpop.permute.xlu0 %55
    %vm58 = vcmask 31744
    %v59 = vsel %vm58, %v52, 0
    %vm61 = vcmask 1043456
    %v63 = vsel %vm61, %v41, 0
    %65 = vmatprep.subr.mxu0 0.0
    %66 = vmatpush1.msra.mxu0 0.0
    %67 = vmatprep.subr.mxu0 0.0
    %68 = vmatpush1.msra.mxu0 0.0
    %69 = vmatprep.subr.mxu0 0.0
    %70 = vmatpush1.msra.mxu0 0.0
    %71 = vmatprep.subr.mxu0 0.0
    %72 = vmatpush1.msra.mxu0 0.0
    %73 = vmatprep.subr.mxu0 0.0
    %74 = vmatpush1.msra.mxu0 0.0
    %75 = vmatprep.subr.mxu0 0.0
    %76 = vmatpush1.msra.mxu0 0.0
    %77 = vmatprep.subr.mxu0 0.0
    %78 = vmatpush1.msra.mxu0 0.0
    %79 = vmatprep.subr.mxu0 0.0
    %80 = vmatpush1.msra.mxu0 0.0
    %81 = vmatprep.subr.mxu0 0.0
    %82 = vmatpush1.msra.mxu0 0.0
    %83 = vmatprep.subr.mxu0 0.0
    %84 = vmatpush1.msra.mxu0 0.0
    %85 = vmatprep.subr.mxu0 0.0
    %86 = vmatpush1.msra.mxu0 0.0
    %87 = vmatprep.subr.mxu0 0.0
    %88 = vmatpush1.msra.mxu0 0.0
    %89 = vmatprep.subr.mxu0 0.0
    %90 = vmatpush1.msra.mxu0 0.0
    %91 = vmatprep.subr.mxu0 0.0
    %92 = vmatpush1.msra.mxu0 0.0
    %93 = vmatprep.subr.mxu0 0.0
    %94 = vmatpush1.msra.mxu0 0.0
    %95 = vmatprep.subr.mxu0 0.0
    %96 = vmatpush1.msra.mxu0 %v63
    %97 = vmatprep.subr.mxu0 0.0
    %98 = vmatpush2.msra.mxu0 0.0
    %99 = vmatprep.subr.mxu0 0.0
    %100 = vmatpush2.msra.mxu0 0.0
    %101 = vmatprep.subr.mxu0 0.0
    %102 = vmatpush2.msra.mxu0 0.0
    %103 = vmatprep.subr.mxu0 0.0
    %104 = vmatpush2.msra.mxu0 0.0
    %105 = vmatprep.subr.mxu0 0.0
    %106 = vmatpush2.msra.mxu0 0.0
    %107 = vmatprep.subr.mxu0 0.0
    %108 = vmatpush2.msra.mxu0 0.0
    %109 = vmatprep.subr.mxu0 0.0
    %110 = vmatpush2.msra.mxu0 0.0
    %111 = vmatprep.subr.mxu0 0.0
    %112 = vmatpush2.msra.mxu0 0.0
    %113 = vmatprep.subr.mxu0 0.0
    %114 = vmatpush2.msra.mxu0 0.0
    %115 = vmatprep.subr.mxu0 0.0
    %116 = vmatpush2.msra.mxu0 0.0
    %117 = vmatprep.subr.mxu0 0.0
    %118 = vmatpush2.msra.mxu0 0.0
    %119 = vmatprep.subr.mxu0 0.0
    %120 = vmatpush2.msra.mxu0 0.0
    %121 = vmatprep.subr.mxu0 0.0
    %122 = vmatpush2.msra.mxu0 0.0
    %123 = vmatprep.subr.mxu0 0.0
    %124 = vmatpush2.msra.mxu0 0.0
    %125 = vmatprep.subr.mxu0 0.0
    %126 = vmatpush2.msra.mxu0 0.0
    %127 = vmatprep.subr.mxu0 0.0
    %128 = vmatpush2.msra.mxu0 0.0
    %129 = vmatprep.mubr.f32.mxu0 0.0
    %130 = vmatmul.mubr.f32.gmra.mxu0 %v59
    %v131 = vpop.f32.mrf.mxu0
    %v132 = vadd.f32 %v56, %v131
    %v133 = vpop.f32.mrf.mxu0
    %134 = vdwg.mxu0
    %s135 = sld [smem:[#allocation5]]
    %vm136 = vcmp.gt.f32.partialorder %v132, 0.0
    %v137 = vstv %s135
    %v138 = vmul.f32 %v137, %v132
    %v139 = vsel %vm136, %v132, %v138
    %141 = vrot.lane.b32.xlu0 %v139, 81
    %v142 = vpop.permute.xlu0 %141
    %144 = vrot.lane.b32.xlu0 %v139, 1
    %v145 = vpop.permute.xlu0 %144
    %vm147 = vcmask 7168
    %v148 = vsel %vm147, %v142, %v145
    %149 = vrot.lane.b32.xlu0 %v139, 127
    %v150 = vpop.permute.xlu0 %149
    %152 = vrot.lane.b32.xlu0 %v139, 47
    %v153 = vpop.permute.xlu0 %152
    %vm155 = vcmask 384000
    %v156 = vsel %vm155, %v150, %v153
    %v157 = vmul.f32 %v148, %v42
    %v158 = vmul.f32 %v139, %v43
    %v159 = vmul.f32 %v156, %v44
    %v160 = vld [vmem:[#allocation2 + $0x20] sm:$0xff]
    %161 = vset.pattern.permute.xlu0 5
    %162 = vperm.xlu0 %161, %v52
    %v163 = vpop.permute.xlu0 %162
    %vm165 = vcmask 195584
    %v167 = vsel %vm165, %v160, 0
    %169 = vmatprep.subr.mxu0 0.0
    %170 = vmatpush1.msra.mxu0 0.0
    %171 = vmatprep.subr.mxu0 0.0
    %172 = vmatpush1.msra.mxu0 0.0
    %173 = vmatprep.subr.mxu0 0.0
    %174 = vmatpush1.msra.mxu0 0.0
    %175 = vmatprep.subr.mxu0 0.0
    %176 = vmatpush1.msra.mxu0 0.0
    %177 = vmatprep.subr.mxu0 0.0
    %178 = vmatpush1.msra.mxu0 0.0
    %179 = vmatprep.subr.mxu0 0.0
    %180 = vmatpush1.msra.mxu0 0.0
    %181 = vmatprep.subr.mxu0 0.0
    %182 = vmatpush1.msra.mxu0 0.0
    %183 = vmatprep.subr.mxu0 0.0
    %184 = vmatpush1.msra.mxu0 0.0
    %185 = vmatprep.subr.mxu0 0.0
    %186 = vmatpush1.msra.mxu0 0.0
    %187 = vmatprep.subr.mxu0 0.0
    %188 = vmatpush1.msra.mxu0 0.0
    %189 = vmatprep.subr.mxu0 0.0
    %190 = vmatpush1.msra.mxu0 0.0
    %191 = vmatprep.subr.mxu0 0.0
    %192 = vmatpush1.msra.mxu0 0.0
    %193 = vmatprep.subr.mxu0 0.0
    %194 = vmatpush1.msra.mxu0 0.0
    %195 = vmatprep.subr.mxu0 0.0
    %196 = vmatpush1.msra.mxu0 %v159
    %197 = vmatprep.subr.mxu0 0.0
    %198 = vmatpush1.msra.mxu0 %v158
    %199 = vmatprep.subr.mxu0 0.0
    %200 = vmatpush1.msra.mxu0 %v157
    %201 = vmatprep.subr.mxu0 0.0
    %202 = vmatpush2.msra.mxu0 0.0
    %203 = vmatprep.subr.mxu0 0.0
    %204 = vmatpush2.msra.mxu0 0.0
    %205 = vmatprep.subr.mxu0 0.0
    %206 = vmatpush2.msra.mxu0 0.0
    %207 = vmatprep.subr.mxu0 0.0
    %208 = vmatpush2.msra.mxu0 0.0
    %209 = vmatprep.subr.mxu0 0.0
    %210 = vmatpush2.msra.mxu0 0.0
    %211 = vmatprep.subr.mxu0 0.0
    %212 = vmatpush2.msra.mxu0 0.0
    %213 = vmatprep.subr.mxu0 0.0
    %214 = vmatpush2.msra.mxu0 0.0
    %215 = vmatprep.subr.mxu0 0.0
    %216 = vmatpush2.msra.mxu0 0.0
    %217 = vmatprep.subr.mxu0 0.0
    %218 = vmatpush2.msra.mxu0 0.0
    %219 = vmatprep.subr.mxu0 0.0
    %220 = vmatpush2.msra.mxu0 0.0
    %221 = vmatprep.subr.mxu0 0.0
    %222 = vmatpush2.msra.mxu0 0.0
    %223 = vmatprep.subr.mxu0 0.0
    %224 = vmatpush2.msra.mxu0 0.0
    %225 = vmatprep.subr.mxu0 0.0
    %226 = vmatpush2.msra.mxu0 0.0
    %227 = vmatprep.subr.mxu0 0.0
    %228 = vmatpush2.msra.mxu0 0.0
    %229 = vmatprep.subr.mxu0 0.0
    %230 = vmatpush2.msra.mxu0 0.0
    %231 = vmatprep.subr.mxu0 0.0
    %232 = vmatpush2.msra.mxu0 0.0
    %233 = vmatprep.mubr.f32.mxu0 0.0
    %234 = vmatmul.mubr.f32.gmra.mxu0 %v167
    %v235 = vpop.f32.mrf.mxu0
    %v236 = vadd.f32 %v163, %v235
    %v237 = vpop.f32.mrf.mxu0
    %238 = vdwg.mxu0
    %s239 = sld [smem:[#allocation5 + $0x1]]
    %vm240 = vcmp.gt.f32.partialorder %v236, 0.0
    %v241 = vstv %s239
    %v242 = vmul.f32 %v241, %v236
    %v243 = vsel %vm240, %v236, %v242
    %245 = vrot.lane.b32.xlu0 %v243, 81
    %v246 = vpop.permute.xlu0 %245
    %248 = vrot.lane.b32.xlu0 %v243, 1
    %v249 = vpop.permute.xlu0 %248
    %v251 = vsel %vm147, %v246, %v249
    %252 = vrot.lane.b32.xlu0 %v243, 127
    %v253 = vpop.permute.xlu0 %252
    %255 = vrot.lane.b32.xlu0 %v243, 47
    %v256 = vpop.permute.xlu0 %255
    %v258 = vsel %vm155, %v253, %v256
    %v259 = vmul.f32 %v251, %v42
    %v260 = vmul.f32 %v243, %v43
    %v261 = vmul.f32 %v258, %v44
    %v262 = vld [vmem:[#allocation2 + $0x28] sm:$0xff]
    %263 = vset.pattern.permute.xlu0 6
    %264 = vperm.xlu0 %263, %v52
    %v265 = vpop.permute.xlu0 %264
    %v268 = vsel %vm165, %v262, 0
    %270 = vmatprep.subr.mxu0 0.0
    %271 = vmatpush1.msra.mxu0 0.0
    %272 = vmatprep.subr.mxu0 0.0
    %273 = vmatpush1.msra.mxu0 0.0
    %274 = vmatprep.subr.mxu0 0.0
    %275 = vmatpush1.msra.mxu0 0.0
    %276 = vmatprep.subr.mxu0 0.0
    %277 = vmatpush1.msra.mxu0 0.0
    %278 = vmatprep.subr.mxu0 0.0
    %279 = vmatpush1.msra.mxu0 0.0
    %280 = vmatprep.subr.mxu0 0.0
    %281 = vmatpush1.msra.mxu0 0.0
    %282 = vmatprep.subr.mxu0 0.0
    %283 = vmatpush1.msra.mxu0 0.0
    %284 = vmatprep.subr.mxu0 0.0
    %285 = vmatpush1.msra.mxu0 0.0
    %286 = vmatprep.subr.mxu0 0.0
    %287 = vmatpush1.msra.mxu0 0.0
    %288 = vmatprep.subr.mxu0 0.0
    %289 = vmatpush1.msra.mxu0 0.0
    %290 = vmatprep.subr.mxu0 0.0
    %291 = vmatpush1.msra.mxu0 0.0
    %292 = vmatprep.subr.mxu0 0.0
    %293 = vmatpush1.msra.mxu0 0.0
    %294 = vmatprep.subr.mxu0 0.0
    %295 = vmatpush1.msra.mxu0 0.0
    %296 = vmatprep.subr.mxu0 0.0
    %297 = vmatpush1.msra.mxu0 %v261
    %298 = vmatprep.subr.mxu0 0.0
    %299 = vmatpush1.msra.mxu0 %v260
    %300 = vmatprep.subr.mxu0 0.0
    %301 = vmatpush1.msra.mxu0 %v259
    %302 = vmatprep.subr.mxu0 0.0
    %303 = vmatpush2.msra.mxu0 0.0
    %304 = vmatprep.subr.mxu0 0.0
    %305 = vmatpush2.msra.mxu0 0.0
    %306 = vmatprep.subr.mxu0 0.0
    %307 = vmatpush2.msra.mxu0 0.0
    %308 = vmatprep.subr.mxu0 0.0
    %309 = vmatpush2.msra.mxu0 0.0
    %310 = vmatprep.subr.mxu0 0.0
    %311 = vmatpush2.msra.mxu0 0.0
    %312 = vmatprep.subr.mxu0 0.0
    %313 = vmatpush2.msra.mxu0 0.0
    %314 = vmatprep.subr.mxu0 0.0
    %315 = vmatpush2.msra.mxu0 0.0
    %316 = vmatprep.subr.mxu0 0.0
    %317 = vmatpush2.msra.mxu0 0.0
    %318 = vmatprep.subr.mxu0 0.0
    %319 = vmatpush2.msra.mxu0 0.0
    %320 = vmatprep.subr.mxu0 0.0
    %321 = vmatpush2.msra.mxu0 0.0
    %322 = vmatprep.subr.mxu0 0.0
    %323 = vmatpush2.msra.mxu0 0.0
    %324 = vmatprep.subr.mxu0 0.0
    %325 = vmatpush2.msra.mxu0 0.0
    %326 = vmatprep.subr.mxu0 0.0
    %327 = vmatpush2.msra.mxu0 0.0
    %328 = vmatprep.subr.mxu0 0.0
    %329 = vmatpush2.msra.mxu0 0.0
    %330 = vmatprep.subr.mxu0 0.0
    %331 = vmatpush2.msra.mxu0 0.0
    %332 = vmatprep.subr.mxu0 0.0
    %333 = vmatpush2.msra.mxu0 0.0
    %334 = vmatprep.mubr.f32.mxu0 0.0
    %335 = vmatmul.mubr.f32.gmra.mxu0 %v268
    %v336 = vpop.f32.mrf.mxu0
    %v337 = vadd.f32 %v265, %v336
    %v338 = vpop.f32.mrf.mxu0
    %339 = vdwg.mxu0
    %vm340 = vcmask 392192
    %v342 = vsel %vm340, %v45, 0
    %v345 = vsel %vm340, %v337, 0
    %347 = vmatprep.subr.mxu0 0.0
    %348 = vmatpush1.xpose.msra.mxu0 0.0
    %349 = vmatprep.subr.mxu0 0.0
    %350 = vmatpush1.xpose.msra.mxu0 0.0
    %351 = vmatprep.subr.mxu0 0.0
    %352 = vmatpush1.xpose.msra.mxu0 0.0
    %353 = vmatprep.subr.mxu0 0.0
    %354 = vmatpush1.xpose.msra.mxu0 0.0
    %355 = vmatprep.subr.mxu0 0.0
    %356 = vmatpush1.xpose.msra.mxu0 0.0
    %357 = vmatprep.subr.mxu0 0.0
    %358 = vmatpush1.xpose.msra.mxu0 0.0
    %359 = vmatprep.subr.mxu0 0.0
    %360 = vmatpush1.xpose.msra.mxu0 0.0
    %361 = vmatprep.subr.mxu0 0.0
    %362 = vmatpush1.xpose.msra.mxu0 0.0
    %363 = vmatprep.subr.mxu0 0.0
    %364 = vmatpush1.xpose.msra.mxu0 0.0
    %365 = vmatprep.subr.mxu0 0.0
    %366 = vmatpush1.xpose.msra.mxu0 0.0
    %367 = vmatprep.subr.mxu0 0.0
    %368 = vmatpush1.xpose.msra.mxu0 0.0
    %369 = vmatprep.subr.mxu0 0.0
    %370 = vmatpush1.xpose.msra.mxu0 0.0
    %371 = vmatprep.subr.mxu0 0.0
    %372 = vmatpush1.xpose.msra.mxu0 0.0
    %373 = vmatprep.subr.mxu0 0.0
    %374 = vmatpush1.xpose.msra.mxu0 0.0
    %375 = vmatprep.subr.mxu0 0.0
    %376 = vmatpush1.xpose.msra.mxu0 0.0
    %377 = vmatprep.subr.mxu0 0.0
    %378 = vmatpush1.xpose.msra.mxu0 %v345
    %379 = vmatprep.subr.mxu0 0.0
    %380 = vmatpush2.xpose.msra.mxu0 0.0
    %381 = vmatprep.subr.mxu0 0.0
    %382 = vmatpush2.xpose.msra.mxu0 0.0
    %383 = vmatprep.subr.mxu0 0.0
    %384 = vmatpush2.xpose.msra.mxu0 0.0
    %385 = vmatprep.subr.mxu0 0.0
    %386 = vmatpush2.xpose.msra.mxu0 0.0
    %387 = vmatprep.subr.mxu0 0.0
    %388 = vmatpush2.xpose.msra.mxu0 0.0
    %389 = vmatprep.subr.mxu0 0.0
    %390 = vmatpush2.xpose.msra.mxu0 0.0
    %391 = vmatprep.subr.mxu0 0.0
    %392 = vmatpush2.xpose.msra.mxu0 0.0
    %393 = vmatprep.subr.mxu0 0.0
    %394 = vmatpush2.xpose.msra.mxu0 0.0
    %395 = vmatprep.subr.mxu0 0.0
    %396 = vmatpush2.xpose.msra.mxu0 0.0
    %397 = vmatprep.subr.mxu0 0.0
    %398 = vmatpush2.xpose.msra.mxu0 0.0
    %399 = vmatprep.subr.mxu0 0.0
    %400 = vmatpush2.xpose.msra.mxu0 0.0
    %401 = vmatprep.subr.mxu0 0.0
    %402 = vmatpush2.xpose.msra.mxu0 0.0
    %403 = vmatprep.subr.mxu0 0.0
    %404 = vmatpush2.xpose.msra.mxu0 0.0
    %405 = vmatprep.subr.mxu0 0.0
    %406 = vmatpush2.xpose.msra.mxu0 0.0
    %407 = vmatprep.subr.mxu0 0.0
    %408 = vmatpush2.xpose.msra.mxu0 0.0
    %409 = vmatprep.subr.mxu0 0.0
    %410 = vmatpush2.xpose.msra.mxu0 0.0
    %411 = vmatprep.mubr.f32.mxu0 0.0
    %412 = vmatmul.mubr.f32.gmra.mxu0 %v342
    %v413 = vpop.f32.mrf.mxu0
    %v414 = vadd.f32 0.0, %v413
    %v415 = vpop.f32.mrf.mxu0
    %416 = vdwg.mxu0
    %v417 = vmul.f32 %v414, 0.041666668
    %v418 = vld [vmem:[#allocation2] sm:$0xff]
    %v419 = vld [vmem:[#allocation2 + $0x18] sm:$0x1]
    %v420 = vlaneseq
    %v421 = vshrl.u32 %v420, 7
    %v422 = vsub.s32 0, %v421
    %v423 = vrot.slane %v419, %v422
    %vm424 = vcmask 64512
    %v426 = vsel %vm424, %v417, 0
    %428 = vmatprep.subr.mxu0 0.0
    %429 = vmatpush1.msra.mxu0 0.0
    %430 = vmatprep.subr.mxu0 0.0
    %431 = vmatpush1.msra.mxu0 0.0
    %432 = vmatprep.subr.mxu0 0.0
    %433 = vmatpush1.msra.mxu0 0.0
    %434 = vmatprep.subr.mxu0 0.0
    %435 = vmatpush1.msra.mxu0 0.0
    %436 = vmatprep.subr.mxu0 0.0
    %437 = vmatpush1.msra.mxu0 0.0
    %438 = vmatprep.subr.mxu0 0.0
    %439 = vmatpush1.msra.mxu0 0.0
    %440 = vmatprep.subr.mxu0 0.0
    %441 = vmatpush1.msra.mxu0 0.0
    %442 = vmatprep.subr.mxu0 0.0
    %443 = vmatpush1.msra.mxu0 0.0
    %444 = vmatprep.subr.mxu0 0.0
    %445 = vmatpush1.msra.mxu0 0.0
    %446 = vmatprep.subr.mxu0 0.0
    %447 = vmatpush1.msra.mxu0 0.0
    %448 = vmatprep.subr.mxu0 0.0
    %449 = vmatpush1.msra.mxu0 0.0
    %450 = vmatprep.subr.mxu0 0.0
    %451 = vmatpush1.msra.mxu0 0.0
    %452 = vmatprep.subr.mxu0 0.0
    %453 = vmatpush1.msra.mxu0 0.0
    %454 = vmatprep.subr.mxu0 0.0
    %455 = vmatpush1.msra.mxu0 0.0
    %456 = vmatprep.subr.mxu0 0.0
    %457 = vmatpush1.msra.mxu0 0.0
    %458 = vmatprep.subr.mxu0 0.0
    %459 = vmatpush1.msra.mxu0 %v418
    %460 = vmatprep.subr.mxu0 0.0
    %461 = vmatpush2.msra.mxu0 0.0
    %462 = vmatprep.subr.mxu0 0.0
    %463 = vmatpush2.msra.mxu0 0.0
    %464 = vmatprep.subr.mxu0 0.0
    %465 = vmatpush2.msra.mxu0 0.0
    %466 = vmatprep.subr.mxu0 0.0
    %467 = vmatpush2.msra.mxu0 0.0
    %468 = vmatprep.subr.mxu0 0.0
    %469 = vmatpush2.msra.mxu0 0.0
    %470 = vmatprep.subr.mxu0 0.0
    %471 = vmatpush2.msra.mxu0 0.0
    %472 = vmatprep.subr.mxu0 0.0
    %473 = vmatpush2.msra.mxu0 0.0
    %474 = vmatprep.subr.mxu0 0.0
    %475 = vmatpush2.msra.mxu0 0.0
    %476 = vmatprep.subr.mxu0 0.0
    %477 = vmatpush2.msra.mxu0 0.0
    %478 = vmatprep.subr.mxu0 0.0
    %479 = vmatpush2.msra.mxu0 0.0
    %480 = vmatprep.subr.mxu0 0.0
    %481 = vmatpush2.msra.mxu0 0.0
    %482 = vmatprep.subr.mxu0 0.0
    %483 = vmatpush2.msra.mxu0 0.0
    %484 = vmatprep.subr.mxu0 0.0
    %485 = vmatpush2.msra.mxu0 0.0
    %486 = vmatprep.subr.mxu0 0.0
    %487 = vmatpush2.msra.mxu0 0.0
    %488 = vmatprep.subr.mxu0 0.0
    %489 = vmatpush2.msra.mxu0 0.0
    %490 = vmatprep.subr.mxu0 0.0
    %491 = vmatpush2.msra.mxu0 0.0
    %492 = vmatprep.mubr.f32.mxu0 0.0
    %493 = vmatmul.mubr.f32.gmra.mxu0 %v426
    %v494 = vpop.f32.mrf.mxu0
    %v495 = vadd.f32 %v423, %v494
    %v496 = vpop.f32.mrf.mxu0
    %497 = vdwg.mxu0
    %v498 = vmax.f32 %v495, 0.0
    %v499 = vld [vmem:[#allocation2 + $0x8] sm:$0xff]
    %500 = vset.pattern.permute.xlu0 7
    %501 = vperm.xlu0 %500, %v52
    %v502 = vpop.permute.xlu0 %501
    %504 = vmatprep.subr.mxu0 0.0
    %505 = vmatpush1.xpose.msra.mxu0 0.0
    %506 = vmatprep.subr.mxu0 0.0
    %507 = vmatpush1.xpose.msra.mxu0 0.0
    %508 = vmatprep.subr.mxu0 0.0
    %509 = vmatpush1.xpose.msra.mxu0 0.0
    %510 = vmatprep.subr.mxu0 0.0
    %511 = vmatpush1.xpose.msra.mxu0 0.0
    %512 = vmatprep.subr.mxu0 0.0
    %513 = vmatpush1.xpose.msra.mxu0 0.0
    %514 = vmatprep.subr.mxu0 0.0
    %515 = vmatpush1.xpose.msra.mxu0 0.0
    %516 = vmatprep.subr.mxu0 0.0
    %517 = vmatpush1.xpose.msra.mxu0 0.0
    %518 = vmatprep.subr.mxu0 0.0
    %519 = vmatpush1.xpose.msra.mxu0 0.0
    %520 = vmatprep.subr.mxu0 0.0
    %521 = vmatpush1.xpose.msra.mxu0 0.0
    %522 = vmatprep.subr.mxu0 0.0
    %523 = vmatpush1.xpose.msra.mxu0 0.0
    %524 = vmatprep.subr.mxu0 0.0
    %525 = vmatpush1.xpose.msra.mxu0 0.0
    %526 = vmatprep.subr.mxu0 0.0
    %527 = vmatpush1.xpose.msra.mxu0 0.0
    %528 = vmatprep.subr.mxu0 0.0
    %529 = vmatpush1.xpose.msra.mxu0 0.0
    %530 = vmatprep.subr.mxu0 0.0
    %531 = vmatpush1.xpose.msra.mxu0 0.0
    %532 = vmatprep.subr.mxu0 0.0
    %533 = vmatpush1.xpose.msra.mxu0 0.0
    %534 = vmatprep.subr.mxu0 0.0
    %535 = vmatpush1.xpose.msra.mxu0 %v498
    %536 = vmatprep.subr.mxu0 0.0
    %537 = vmatpush2.xpose.msra.mxu0 0.0
    %538 = vmatprep.subr.mxu0 0.0
    %539 = vmatpush2.xpose.msra.mxu0 0.0
    %540 = vmatprep.subr.mxu0 0.0
    %541 = vmatpush2.xpose.msra.mxu0 0.0
    %542 = vmatprep.subr.mxu0 0.0
    %543 = vmatpush2.xpose.msra.mxu0 0.0
    %544 = vmatprep.subr.mxu0 0.0
    %545 = vmatpush2.xpose.msra.mxu0 0.0
    %546 = vmatprep.subr.mxu0 0.0
    %547 = vmatpush2.xpose.msra.mxu0 0.0
    %548 = vmatprep.subr.mxu0 0.0
    %549 = vmatpush2.xpose.msra.mxu0 0.0
    %550 = vmatprep.subr.mxu0 0.0
    %551 = vmatpush2.xpose.msra.mxu0 0.0
    %552 = vmatprep.subr.mxu0 0.0
    %553 = vmatpush2.xpose.msra.mxu0 0.0
    %554 = vmatprep.subr.mxu0 0.0
    %555 = vmatpush2.xpose.msra.mxu0 0.0
    %556 = vmatprep.subr.mxu0 0.0
    %557 = vmatpush2.xpose.msra.mxu0 0.0
    %558 = vmatprep.subr.mxu0 0.0
    %559 = vmatpush2.xpose.msra.mxu0 0.0
    %560 = vmatprep.subr.mxu0 0.0
    %561 = vmatpush2.xpose.msra.mxu0 0.0
    %562 = vmatprep.subr.mxu0 0.0
    %563 = vmatpush2.xpose.msra.mxu0 0.0
    %564 = vmatprep.subr.mxu0 0.0
    %565 = vmatpush2.xpose.msra.mxu0 0.0
    %566 = vmatprep.subr.mxu0 0.0
    %567 = vmatpush2.xpose.msra.mxu0 0.0
    %568 = vmatprep.mubr.f32.mxu0 0.0
    %569 = vmatmul.mubr.f32.gmra.mxu0 %v499
    %v570 = vpop.f32.mrf.mxu0
    %v571 = vadd.f32 %v502, %v570
    %v572 = vpop.f32.mrf.mxu0
    %573 = vdwg.mxu0
    %v574 = vxor.u32 %v571, 2147483648
    %v575 = vmul.f32 %v574, 1.442695
    %v576 = vpow.pop %v575
    %v577 = vadd.f32 %v576, 1.0
    %v578 = vrcp.pop %v577
    %v579 = vmul.f32 1.0, %v578
    %vm580 = vcmask 15360
    %v582 = vsel %vm580, %v579, 0
    %vm584 = vcmask 1041408
    %v585 = vsel %vm584, %v45, 0
    %587 = vmatprep.subr.mxu0 0.0
    %588 = vmatpush1.msra.mxu0 0.0
    %589 = vmatprep.subr.mxu0 0.0
    %590 = vmatpush1.msra.mxu0 0.0
    %591 = vmatprep.subr.mxu0 0.0
    %592 = vmatpush1.msra.mxu0 0.0
    %593 = vmatprep.subr.mxu0 0.0
    %594 = vmatpush1.msra.mxu0 0.0
    %595 = vmatprep.subr.mxu0 0.0
    %596 = vmatpush1.msra.mxu0 0.0
    %597 = vmatprep.subr.mxu0 0.0
    %598 = vmatpush1.msra.mxu0 0.0
    %599 = vmatprep.subr.mxu0 0.0
    %600 = vmatpush1.msra.mxu0 0.0
    %601 = vmatprep.subr.mxu0 0.0
    %602 = vmatpush1.msra.mxu0 0.0
    %603 = vmatprep.subr.mxu0 0.0
    %604 = vmatpush1.msra.mxu0 0.0
    %605 = vmatprep.subr.mxu0 0.0
    %606 = vmatpush1.msra.mxu0 0.0
    %607 = vmatprep.subr.mxu0 0.0
    %608 = vmatpush1.msra.mxu0 0.0
    %609 = vmatprep.subr.mxu0 0.0
    %610 = vmatpush1.msra.mxu0 0.0
    %611 = vmatprep.subr.mxu0 0.0
    %612 = vmatpush1.msra.mxu0 0.0
    %613 = vmatprep.subr.mxu0 0.0
    %614 = vmatpush1.msra.mxu0 0.0
    %615 = vmatprep.subr.mxu0 0.0
    %616 = vmatpush1.msra.mxu0 0.0
    %617 = vmatprep.subr.mxu0 0.0
    %618 = vmatpush1.msra.mxu0 %v585
    %619 = vmatprep.subr.mxu0 0.0
    %620 = vmatpush2.msra.mxu0 0.0
    %621 = vmatprep.subr.mxu0 0.0
    %622 = vmatpush2.msra.mxu0 0.0
    %623 = vmatprep.subr.mxu0 0.0
    %624 = vmatpush2.msra.mxu0 0.0
    %625 = vmatprep.subr.mxu0 0.0
    %626 = vmatpush2.msra.mxu0 0.0
    %627 = vmatprep.subr.mxu0 0.0
    %628 = vmatpush2.msra.mxu0 0.0
    %629 = vmatprep.subr.mxu0 0.0
    %630 = vmatpush2.msra.mxu0 0.0
    %631 = vmatprep.subr.mxu0 0.0
    %632 = vmatpush2.msra.mxu0 0.0
    %633 = vmatprep.subr.mxu0 0.0
    %634 = vmatpush2.msra.mxu0 0.0
    %635 = vmatprep.subr.mxu0 0.0
    %636 = vmatpush2.msra.mxu0 0.0
    %637 = vmatprep.subr.mxu0 0.0
    %638 = vmatpush2.msra.mxu0 0.0
    %639 = vmatprep.subr.mxu0 0.0
    %640 = vmatpush2.msra.mxu0 0.0
    %641 = vmatprep.subr.mxu0 0.0
    %642 = vmatpush2.msra.mxu0 0.0
    %643 = vmatprep.subr.mxu0 0.0
    %644 = vmatpush2.msra.mxu0 0.0
    %645 = vmatprep.subr.mxu0 0.0
    %646 = vmatpush2.msra.mxu0 0.0
    %647 = vmatprep.subr.mxu0 0.0
    %648 = vmatpush2.msra.mxu0 0.0
    %649 = vmatprep.subr.mxu0 0.0
    %650 = vmatpush2.msra.mxu0 0.0
    %651 = vmatprep.mubr.f32.mxu0 0.0
    %652 = vmatmul.mubr.f32.gmra.mxu0 %v582
    %v653 = vpop.f32.mrf.mxu0
    %v654 = vadd.f32 0.0, %v653
    %v655 = vpop.f32.mrf.mxu0
    %656 = vdwg.mxu0
    %v657 = vmul.f32 %v337, %v654
    %v658 = vadd.f32 %v657, %v139
    %s659 = sld [smem:[#allocation5 + $0x2]]
    %vm660 = vcmp.gt.f32.partialorder %v658, 0.0
    %v661 = vstv %s659
    %v662 = vmul.f32 %v661, %v658
    %v663 = vsel %vm660, %v658, %v662
    %665 = vrot.lane.b32.xlu0 %v663, 127
    %v666 = vpop.permute.xlu0 %665
    %668 = vrot.lane.b32.xlu0 %v663, 47
    %v669 = vpop.permute.xlu0 %668
    %v671 = vsel %vm155, %v666, %v669
    %v672 = vmax.f32 %v663, %v671
    %673 = vrot.lane.b32.xlu0 %v663, 126
    %v674 = vpop.permute.xlu0 %673
    %676 = vrot.lane.b32.xlu0 %v663, 46
    %v677 = vpop.permute.xlu0 %676
    %vm679 = vcmask 375808
    %v680 = vsel %vm679, %v674, %v677
    %v681 = vmax.f32 %v672, %v680
    %v683 = vsel %vm340, %v681, 0
    %685 = vmatprep.subr.mxu0 0.0
    %686 = vmatpush1.msra.mxu0 0.0
    %687 = vmatprep.subr.mxu0 0.0
    %688 = vmatpush1.msra.mxu0 0.0
    %689 = vmatprep.subr.mxu0 0.0
    %690 = vmatpush1.msra.mxu0 0.0
    %691 = vmatprep.subr.mxu0 0.0
    %692 = vmatpush1.msra.mxu0 0.0
    %693 = vmatprep.subr.mxu0 0.0
    %694 = vmatpush1.msra.mxu0 0.0
    %695 = vmatprep.subr.mxu0 0.0
    %696 = vmatpush1.msra.mxu0 0.0
    %697 = vmatprep.subr.mxu0 0.0
    %698 = vmatpush1.msra.mxu0 0.0
    %699 = vmatprep.subr.mxu0 0.0
    %700 = vmatpush1.msra.mxu0 0.0
    %701 = vmatprep.subr.mxu0 0.0
    %702 = vmatpush1.msra.mxu0 0.0
    %703 = vmatprep.subr.mxu0 0.0
    %704 = vmatpush1.msra.mxu0 0.0
    %705 = vmatprep.subr.mxu0 0.0
    %706 = vmatpush1.msra.mxu0 %v51
    %707 = vmatprep.subr.mxu0 0.0
    %708 = vmatpush1.msra.mxu0 %v50
    %709 = vmatprep.subr.mxu0 0.0
    %710 = vmatpush1.msra.mxu0 %v49
    %711 = vmatprep.subr.mxu0 0.0
    %712 = vmatpush1.msra.mxu0 %v48
    %713 = vmatprep.subr.mxu0 0.0
    %714 = vmatpush1.msra.mxu0 %v47
    %715 = vmatprep.subr.mxu0 0.0
    %716 = vmatpush1.msra.mxu0 %v46
    %717 = vmatprep.subr.mxu0 0.0
    %718 = vmatpush2.msra.mxu0 0.0
    %719 = vmatprep.subr.mxu0 0.0
    %720 = vmatpush2.msra.mxu0 0.0
    %721 = vmatprep.subr.mxu0 0.0
    %722 = vmatpush2.msra.mxu0 0.0
    %723 = vmatprep.subr.mxu0 0.0
    %724 = vmatpush2.msra.mxu0 0.0
    %725 = vmatprep.subr.mxu0 0.0
    %726 = vmatpush2.msra.mxu0 0.0
    %727 = vmatprep.subr.mxu0 0.0
    %728 = vmatpush2.msra.mxu0 0.0
    %729 = vmatprep.subr.mxu0 0.0
    %730 = vmatpush2.msra.mxu0 0.0
    %731 = vmatprep.subr.mxu0 0.0
    %732 = vmatpush2.msra.mxu0 0.0
    %733 = vmatprep.subr.mxu0 0.0
    %734 = vmatpush2.msra.mxu0 0.0
    %735 = vmatprep.subr.mxu0 0.0
    %736 = vmatpush2.msra.mxu0 0.0
    %737 = vmatprep.subr.mxu0 0.0
    %738 = vmatpush2.msra.mxu0 0.0
    %739 = vmatprep.subr.mxu0 0.0
    %740 = vmatpush2.msra.mxu0 0.0
    %741 = vmatprep.subr.mxu0 0.0
    %742 = vmatpush2.msra.mxu0 0.0
    %743 = vmatprep.subr.mxu0 0.0
    %744 = vmatpush2.msra.mxu0 0.0
    %745 = vmatprep.subr.mxu0 0.0
    %746 = vmatpush2.msra.mxu0 0.0
    %747 = vmatprep.subr.mxu0 0.0
    %748 = vmatpush2.msra.mxu0 0.0
    %749 = vmatprep.mubr.f32.mxu0 0.0
    %750 = vmatmul.mubr.f32.gmra.mxu0 %v683
    %v751 = vpop.f32.mrf.mxu0
    %v752 = vadd.f32 0.0, %v751
    %v753 = vpop.f32.mrf.mxu0
    %754 = vdwg.mxu0
    %vm755 = vcmask 130048
    %756 = vst.msk [vmem:[%s3] sm:$0xff] %vm755, %v752
    // Predicated region
    $region22: #{sampcnn_resn_forward.1} parent=1 // pred_check
      _
    $region23: #{sampcnn_resn_forward.1} parent=1 // pred_check_branch
      %758 = sbr.rel (0) target = $region25
    $region24: #{sampcnn_resn_forward.1} parent=1 // pred_region
      _
    $region25: #{sampcnn_resn_forward.1} parent=1 // pred_fallthru
      _
    // Predicated region
    $region26: #{sampcnn_resn_forward.1} parent=1 // pred_check
      _
    $region27: #{sampcnn_resn_forward.1} parent=1 // pred_check_branch
      %760 = sbr.rel (0) target = $region29
    $region28: #{sampcnn_resn_forward.1} parent=1 // pred_region
      _
    $region29: #{sampcnn_resn_forward.1} parent=1 // pred_fallthru
      _
    %761 = vsyncpa [#allocation3], 1
    %762 = vsyncpa [#allocation4], 1

</llo_original>
